<compile_context>
chip_gen: v6e
topology: v6e:2x2x1
jax: 0.10.0
libtpu: 0.0.40
codegen_flags: <defaults>
</compile_context>

<pallas_src>
import functools
import math

import jax
import jax.numpy as jnp
from jax import lax
from jax.experimental import pallas as pl
from jax.experimental.pallas import tpu as pltpu

_LANE = 128
_SUB = 8


def _round_up(a, m):
    return ((a + m - 1) // m) * m


def _vmem_budget_bytes():
    """Per-generation VMEM budget, leaving headroom below physical capacity."""
    phys = 64 << 20                              # conservative default (v7x)
    try:
        info = pltpu.get_tpu_info()
        cap = getattr(info, "vmem_capacity_bytes", None)
        if cap:
            phys = int(cap)
    except Exception:
        pass
    return min(phys * 3 // 4, 100 << 20)         # ~96 MiB v5e/v6e, ~48 MiB v7x


def _pick_blocks(B, T, Ep, Hp, dsize, budget, block_q=None, block_k=None):
    """Choose (batch block, query tile, kv tile, padded T) under a VMEM budget."""
    T8 = _round_up(T, _SUB)
    tq = min(T8, 256 if block_q is None else max(_SUB, _round_up(block_q, _SUB)))
    tk = min(T8, 256 if block_k is None else max(_SUB, _round_up(block_k, _SUB)))

    def usage(bb, tq_, tk_):
        u = 2 * bb * tq_ * Ep * dsize            # x (Q rows), double-buffered
        u += 2 * bb * tk_ * Ep * dsize           # x (KV rows), double-buffered
        u += 2 * Ep * 3 * Hp * dsize             # fused QKV weight
        u += 2 * bb * tq_ * Hp * dsize           # output tile
        u += 2 * bb * tq_ * Hp * 4               # q + acc f32 scratch
        u += 2 * bb * tq_ * 4                    # m + l scratch
        u += bb * tk_ * 3 * Hp * 4               # kv projection intermediate
        u += 3 * bb * tq_ * tk_ * 4              # logits / exp / p live copies
        return u

    # shrink the default 256 tiles if even a single-batch block blows the budget
    if usage(1, tq, tk) > budget and tk == 256:
        tk = 128
    if usage(1, tq, tk) > budget and tq == 256:
        tq = 128

    Tpad = _round_up(T8, math.lcm(tq, tk))
    grid_q = Tpad // tq

    # Grow the batch block to fill the MXU M-dim / amortize ~0.35us per-step
    # overhead, but keep >=2 parallel grid steps so both v7x TCs get work.
    bb_cap = max(8, 256 // tq)
    if B > 1 and grid_q == 1:
        bb_cap = min(bb_cap, max(1, (B + 1) // 2))
    bb = 1
    while bb * 2 <= min(B, bb_cap) and usage(bb * 2, tq, tk) <= budget:
        bb *= 2
    return bb, tq, tk, Tpad


def _head_kernel(seq_ref, xq_ref, xkv_ref, w_ref, out_ref,
                 q_sc, m_sc, l_sc, acc_sc, *, t_orig, kv_padded, mxu_dtype):
    """One grid step = (batch block, query tile, kv tile)."""
    bb, tq, ep = xq_ref.shape
    tk = xkv_ref.shape[1]
    hp = out_ref.shape[-1]

    b = pl.program_id(0)
    qi = pl.program_id(1)
    ki = pl.program_id(2)
    b0 = b * bb

    def seq_bcast(n):
        # (bb, n, 1) per-row sequence lengths built from SMEM scalars (bb small, static).
        bidx = lax.broadcasted_iota(jnp.int32, (bb, n, 1), 0)
        s = jnp.zeros((bb, n, 1), jnp.int32)
        for i in range(bb):
            s = jnp.where(bidx == i, seq_ref[b0 + i], s)
        return s

    @pl.when(ki == 0)
    def _init():
        # Fused, pre-scaled Q projection for this (batch, query-tile) block;
        # MXU accumulates in f32 regardless of the input dtype.
        q = jnp.dot(xq_ref[...].reshape(bb * tq, ep), w_ref[:, :hp],
                    preferred_element_type=jnp.float32).reshape(bb, tq, hp)
        qpos = qi * tq + lax.broadcasted_iota(jnp.int32, (bb, tq, 1), 1)
        q_sc[...] = jnp.where(qpos >= seq_bcast(tq), 0.0, q)
        m_sc[...] = jnp.full(m_sc.shape, -jnp.inf, dtype=m_sc.dtype)
        l_sc[...] = jnp.zeros(l_sc.shape, dtype=l_sc.dtype)
        acc_sc[...] = jnp.zeros(acc_sc.shape, dtype=acc_sc.dtype)

    # Fused K,V projection of this KV tile (one MXU matmul).
    kv = jnp.dot(xkv_ref[...].reshape(bb * tk, ep), w_ref[:, hp:],
                 preferred_element_type=jnp.float32).reshape(bb, tk, 2 * hp)
    kpos = ki * tk + lax.broadcasted_iota(jnp.int32, (bb, tk, 1), 1)
    k = jnp.where(kpos >= seq_bcast(tk), 0.0, kv[:, :, :hp])   # mask k, NOT v
    v = kv[:, :, hp:]

    # Scaled logits: 1/sqrt(head_size) is pre-folded into the Wq columns.
    # bf16 MXU inputs when activations are bf16; f32 accumulation either way.
    s = jnp.einsum("bqh,bkh->bqk",
                   q_sc[...].astype(mxu_dtype), k.astype(mxu_dtype),
                   preferred_element_type=jnp.float32)          # (bb, tq, tk)

    # Online softmax update across the KV grid axis.
    m_prev = m_sc[...]
    m_new = jnp.maximum(m_prev, jnp.max(s, axis=-1, keepdims=True))
    alpha = jnp.exp(m_prev - m_new)
    p = jnp.exp(s - m_new)
    if kv_padded:
        # KV columns beyond the true T do not exist in the reference; drop
        # their (zero-logit) contribution to the softmax denominator.
        kcols = ki * tk + lax.broadcasted_iota(jnp.int32, (bb, 1, tk), 2)
        p = jnp.where(kcols < t_orig, p, 0.0)
    l_sc[...] = alpha * l_sc[...] + jnp.sum(p, axis=-1, keepdims=True)
    acc_sc[...] = alpha * acc_sc[...] + jnp.einsum(
        "bqk,bkh->bqh", p.astype(mxu_dtype), v.astype(mxu_dtype),
        preferred_element_type=jnp.float32)
    m_sc[...] = m_new

    @pl.when(ki == pl.num_programs(2) - 1)
    def _finalize():
        # Exact divide (l >= 1 since zero-masked q/k keep all logits finite);
        # the reference's torch.isnan(weights) guard is vacuous for finite inputs.
        out_ref[...] = (acc_sc[...] / l_sc[...]).astype(out_ref.dtype)


def head_forward(x, wq, wk, wv, seq_lengths=None, *,
                 block_q=None, block_k=None, interpret=False):
    """Pallas TPU forward of Head (single-head self-attention with padding mask).

    x           : (B, T, E) or (T, E)
    wq, wk, wv  : (H, E) nn.Linear weights (no bias)
    seq_lengths : (B,) int32; defaults to full length T
    """
    squeeze = x.ndim == 2
    if squeeze:
        # 2-D torch path == batch of 1, full sequence length (no masking)
        x = x[None]
    B, T, E = x.shape
    H = wq.shape[0]

    if seq_lengths is None:
        seq_lengths = jnp.full((B,), T, dtype=jnp.int32)
    seq_lengths = jnp.asarray(seq_lengths, dtype=jnp.int32).reshape(B)

    dsize = jnp.dtype(x.dtype).itemsize
    # Lane-dense padded head / embedding dims (unmasked vld/vst, full MXU K dim).
    # TODO(synk): if this head is one of several, fuse heads so the true output
    # last dim is n_heads*H >= 128 instead of zero-padding a lone head to 128.
    Hp = _round_up(max(H, _LANE), _LANE)
    # TODO(synk): pad E at the model level to avoid the one-time XLA pad of x here.
    Ep = _round_up(max(E, _LANE), _LANE)

    budget = _vmem_budget_bytes()
    bb, tq, tk, Tpad = _pick_blocks(B, T, Ep, Hp, dsize, budget, block_q, block_k)
    grid_b = -(-B // bb)
    Bp = grid_b * bb

    # Fused (Ep, 3*Hp) QKV weight; 1/sqrt(head_size) folded into the Wq columns
    # (removes an O(T^2) VPU multiply from the hottest tile).
    scale = 1.0 / math.sqrt(H)

    def _prep(w, col_scale=1.0):
        wt = (jnp.asarray(w, jnp.float32).T * col_scale).astype(x.dtype)   # (E, H)
        return jnp.pad(wt, ((0, Ep - E), (0, Hp - H)))

    w_qkv = jnp.concatenate([_prep(wq, scale), _prep(wk), _prep(wv)], axis=1)

    xp = x
    if (Bp, Tpad, Ep) != (B, T, E):
        xp = jnp.pad(x, ((0, Bp - B), (0, Tpad - T), (0, Ep - E)))
    seqp = seq_lengths if Bp == B else jnp.pad(seq_lengths, (0, Bp - B))

    mxu_dtype = jnp.bfloat16 if x.dtype == jnp.bfloat16 else jnp.float32
    kernel = functools.partial(_head_kernel, t_orig=T, kv_padded=(Tpad != T),
                               mxu_dtype=mxu_dtype)

    out = pl.pallas_call(
        kernel,
        out_shape=jax.ShapeDtypeStruct((Bp, Tpad, Hp), x.dtype),
        grid_spec=pltpu.PrefetchScalarGridSpec(
            num_scalar_prefetch=1,                       # seq lengths -> SMEM scalars
            grid=(Bp // bb, Tpad // tq, Tpad // tk),     # KV/reduction axis last
            in_specs=[
                pl.BlockSpec((bb, tq, Ep), lambda b, q, k, seq: (b, q, 0)),  # x (Q rows)
                pl.BlockSpec((bb, tk, Ep), lambda b, q, k, seq: (b, k, 0)),  # x (KV rows)
                pl.BlockSpec((Ep, 3 * Hp), lambda b, q, k, seq: (0, 0)),     # fused W (resident)
            ],
            out_specs=pl.BlockSpec((bb, tq, Hp), lambda b, q, k, seq: (b, q, 0)),
            scratch_shapes=[
                pltpu.VMEM((bb, tq, Hp), jnp.float32),   # masked, pre-scaled q
                pltpu.VMEM((bb, tq, 1), jnp.float32),    # running max
                pltpu.VMEM((bb, tq, 1), jnp.float32),    # running denominator
                pltpu.VMEM((bb, tq, Hp), jnp.float32),   # running numerator
            ],
        ),
        compiler_params=pltpu.CompilerParams(
            dimension_semantics=("parallel", "parallel", "arbitrary"),
            vmem_limit_bytes=int(budget),
        ),
        interpret=interpret,
    )(seqp, xp, xp, w_qkv)

    out = out[:B, :T, :H]
    if squeeze:
        out = out[0]
    return out


def _reference(x, wq, wk, wv, seq_lengths):
    """Pure-JAX reference mirroring the PyTorch 3-D path."""
    q = jnp.einsum("bte,he->bth", x, wq)
    k = jnp.einsum("bte,he->bth", x, wk)
    v = jnp.einsum("bte,he->bth", x, wv)
    T = x.shape[1]
    H = q.shape[-1]
    pad = (jnp.arange(T)[None, :] >= seq_lengths[:, None])[..., None]   # (B,T,1)
    q = jnp.where(pad, 0.0, q)
    k = jnp.where(pad, 0.0, k)
    logits = jnp.einsum("bth,bsh->bts", q, k) / math.sqrt(H)
    w = jax.nn.softmax(logits, axis=-1)
    w = jnp.where(jnp.isnan(w), jnp.zeros_like(w), w)
    return jnp.einsum("bts,bsh->bth", w, v)


if __name__ == "__main__":
    B, T, E, H = 2, 8, 32, 16
    key = jax.random.PRNGKey(0)
    kx, kq, kk, kv, kx2, kx3 = jax.random.split(key, 6)

    # nn.Linear(E, H, bias=False) weight shape: (H, E); deterministic init
    bound = 1.0 / math.sqrt(E)
    wq = jax.random.uniform(kq, (H, E), minval=-bound, maxval=bound, dtype=jnp.float32)
    wk = jax.random.uniform(kk, (H, E), minval=-bound, maxval=bound, dtype=jnp.float32)
    wv = jax.random.uniform(kv, (H, E), minval=-bound, maxval=bound, dtype=jnp.float32)

    # --- 3-D batched path, single tile ---------------------------------------
    x = jax.random.normal(kx, (B, T, E), dtype=jnp.float32)
    seq = jnp.array([5, 8], dtype=jnp.int32)
    out = jax.block_until_ready(head_forward(x, wq, wk, wv, seq))
    ref = _reference(x, wq, wk, wv, seq)
    assert out.shape == (B, T, H)
    assert jnp.allclose(out, ref, atol=2e-3, rtol=2e-3), "batched path mismatch"

    # --- T not a multiple of 8 (exercises the padded-KV-column mask) ---------
    T2 = 10
    x2 = jax.random.normal(kx2, (B, T2, E), dtype=jnp.float32)
    seq2 = jnp.array([7, 10], dtype=jnp.int32)
    out2 = jax.block_until_ready(head_forward(x2, wq, wk, wv, seq2))
    ref2 = _reference(x2, wq, wk, wv, seq2)
    assert out2.shape == (B, T2, H)
    assert jnp.allclose(out2, ref2, atol=2e-3, rtol=2e-3), "padded-T path mismatch"

    # --- multi-tile online-softmax path (forced tiny Q/KV tiles) -------------
    T3 = 24
    x3 = jax.random.normal(kx3, (1, T3, E), dtype=jnp.float32)
    seq3 = jnp.array([17], dtype=jnp.int32)
    out3 = jax.block_until_ready(
        head_forward(x3, wq, wk, wv, seq3, block_q=8, block_k=8))
    ref3 = _reference(x3, wq, wk, wv, seq3)
    assert out3.shape == (1, T3, H)
    assert jnp.allclose(out3, ref3, atol=2e-3, rtol=2e-3), "tiled path mismatch"

    # --- 2-D (unbatched, unmasked) torch path --------------------------------
    out2d = jax.block_until_ready(head_forward(x[0], wq, wk, wv))
    ref2d = _reference(x[:1], wq, wk, wv, jnp.array([T], dtype=jnp.int32))[0]
    assert out2d.shape == (T, H)
    assert jnp.allclose(out2d, ref2d, atol=2e-3, rtol=2e-3), "2-D path mismatch"

    print("KERNEL_OK")
</pallas_src>

<mosaic_0001>
module attributes {stable_mosaic.version = 11 : i64} {
  func.func @_head_kernel(%arg0: i32, %arg1: i32, %arg2: i32, %arg3: memref<2xi32, #tpu.memory_space<smem>>, %arg4: memref<1x8x128xf32, #tpu.memory_space<vmem>>, %arg5: memref<1x8x128xf32, #tpu.memory_space<vmem>>, %arg6: memref<128x384xf32, #tpu.memory_space<vmem>>, %arg7: memref<1x8x128xf32, #tpu.memory_space<vmem>>, %arg8: memref<1x8x128xf32, #tpu.memory_space<vmem>>, %arg9: memref<1x8x1xf32, #tpu.memory_space<vmem>>, %arg10: memref<1x8x1xf32, #tpu.memory_space<vmem>>, %arg11: memref<1x8x128xf32, #tpu.memory_space<vmem>>) attributes {dimension_semantics = [#tpu.dimension_semantics<parallel>, #tpu.dimension_semantics<parallel>, #tpu.dimension_semantics<arbitrary>], iteration_bounds = array<i64: 2, 1, 1>, scalar_prefetch = 1 : i64, scratch_operands = 4 : i64, tpu.core_type = #tpu.core_type<tc>, window_params = [{transform_indices = @transform_0, window_bounds = array<i64: 1, 8, 128>}, {transform_indices = @transform_1, window_bounds = array<i64: 1, 8, 128>}, {pipeline_mode = #tpu.pipeline_mode<synchronous>, transform_indices = @transform_2, window_bounds = array<i64: 128, 384>}, {transform_indices = @transform_3, window_bounds = array<i64: 1, 8, 128>}]} {
    %c1_i32 = arith.constant 1 : i32
    %0 = arith.muli %arg0, %c1_i32 : i32
    %c0_i32 = arith.constant 0 : i32
    %1 = arith.cmpi eq, %arg2, %c0_i32 : i32
    %2 = arith.extui %1 : i1 to i32
    %c0_i32_0 = arith.constant 0 : i32
    %3 = arith.cmpi ne, %2, %c0_i32_0 : i32
    scf.if %3 {
      %c0_35 = arith.constant 0 : index
      %c0_36 = arith.constant 0 : index
      %c0_37 = arith.constant 0 : index
      %56 = vector.load %arg4[%c0_35, %c0_36, %c0_37] : memref<1x8x128xf32, #tpu.memory_space<vmem>>, vector<1x8x128xf32>
      %57 = vector.shape_cast %56 : vector<1x8x128xf32> to vector<8x128xf32>
      %c0_38 = arith.constant 0 : index
      %c0_39 = arith.constant 0 : index
      %58 = vector.load %arg6[%c0_38, %c0_39] : memref<128x384xf32, #tpu.memory_space<vmem>>, vector<128x128xf32>
      %cst_40 = arith.constant dense<0.000000e+00> : vector<8x128xf32>
      %59 = tpu.matmul %57, %58, %cst_40 {dimension_numbers = #tpu.dot_dimension_numbers<[1], [0], [0], [1], [0, 0, 1, 1], [], []>} : vector<8x128xf32>, vector<128x128xf32>, vector<8x128xf32> -> vector<8x128xf32>
      %60 = vector.shape_cast %59 : vector<8x128xf32> to vector<1x8x128xf32>
      %c8_i32_41 = arith.constant 8 : i32
      %61 = arith.muli %arg1, %c8_i32_41 : i32
      %62 = tpu.iota {dimensions = array<i32: 1>} : vector<1x8x1xi32>
      %63 = vector.broadcast %61 : i32 to vector<1x8x1xi32>
      %64 = arith.addi %63, %62 : vector<1x8x1xi32>
      %65 = tpu.iota {dimensions = array<i32: 0>} : vector<1x8x1xi32>
      %c0_i32_42 = arith.constant 0 : i32
      %66 = vector.broadcast %c0_i32_42 : i32 to vector<1x8x1xi32>
      %c0_i32_43 = arith.constant 0 : i32
      %67 = vector.broadcast %c0_i32_43 : i32 to vector<1x8x1xi32>
      %68 = arith.cmpi eq, %65, %67 : vector<1x8x1xi32>
      %c0_i32_44 = arith.constant 0 : i32
      %69 = arith.addi %0, %c0_i32_44 : i32
      %70 = arith.index_cast %69 : i32 to index
      %71 = memref.load %arg3[%70] : memref<2xi32, #tpu.memory_space<smem>>
      %72 = vector.broadcast %71 : i32 to vector<1x8x1xi32>
      %73 = arith.select %68, %72, %66 : vector<1x8x1xi1>, vector<1x8x1xi32>
      %74 = arith.cmpi sge, %64, %73 : vector<1x8x1xi32>
      %cst_45 = arith.constant 0.000000e+00 : f32
      %75 = vector.shape_cast %74 : vector<1x8x1xi1> to vector<1x8x1xi1>
      %76 = vector.broadcast %75 : vector<1x8x1xi1> to vector<1x8x128xi1>
      %77 = vector.broadcast %cst_45 : f32 to vector<1x8x128xf32>
      %78 = arith.select %76, %77, %60 : vector<1x8x128xi1>, vector<1x8x128xf32>
      %c0_46 = arith.constant 0 : index
      %c0_47 = arith.constant 0 : index
      %c0_48 = arith.constant 0 : index
      %79 = vector.load %arg8[%c0_46, %c0_47, %c0_48] : memref<1x8x128xf32, #tpu.memory_space<vmem>>, vector<1x8x128xf32>
      tpu.vector_store %arg8[%c0_46, %c0_47, %c0_48], %78 {strides = array<i32>} : memref<1x8x128xf32, #tpu.memory_space<vmem>>, vector<1x8x128xf32>,
      %cst_49 = arith.constant 0xFF800000 : f32
      %80 = vector.broadcast %cst_49 : f32 to vector<1x8x1xf32>
      %c0_50 = arith.constant 0 : index
      %c0_51 = arith.constant 0 : index
      %c0_52 = arith.constant 0 : index
      %81 = vector.load %arg9[%c0_50, %c0_51, %c0_52] : memref<1x8x1xf32, #tpu.memory_space<vmem>>, vector<1x8x1xf32>
      tpu.vector_store %arg9[%c0_50, %c0_51, %c0_52], %80 {strides = array<i32>} : memref<1x8x1xf32, #tpu.memory_space<vmem>>, vector<1x8x1xf32>,
      %cst_53 = arith.constant 0.000000e+00 : f32
      %82 = vector.broadcast %cst_53 : f32 to vector<1x8x1xf32>
      %c0_54 = arith.constant 0 : index
      %c0_55 = arith.constant 0 : index
      %c0_56 = arith.constant 0 : index
      %83 = vector.load %arg10[%c0_54, %c0_55, %c0_56] : memref<1x8x1xf32, #tpu.memory_space<vmem>>, vector<1x8x1xf32>
      tpu.vector_store %arg10[%c0_54, %c0_55, %c0_56], %82 {strides = array<i32>} : memref<1x8x1xf32, #tpu.memory_space<vmem>>, vector<1x8x1xf32>,
      %cst_57 = arith.constant 0.000000e+00 : f32
      %84 = vector.broadcast %cst_57 : f32 to vector<1x8x128xf32>
      %c0_58 = arith.constant 0 : index
      %c0_59 = arith.constant 0 : index
      %c0_60 = arith.constant 0 : index
      %85 = vector.load %arg11[%c0_58, %c0_59, %c0_60] : memref<1x8x128xf32, #tpu.memory_space<vmem>>, vector<1x8x128xf32>
      tpu.vector_store %arg11[%c0_58, %c0_59, %c0_60], %84 {strides = array<i32>} : memref<1x8x128xf32, #tpu.memory_space<vmem>>, vector<1x8x128xf32>,
    } else {
    }
    %c0 = arith.constant 0 : index
    %c0_1 = arith.constant 0 : index
    %c0_2 = arith.constant 0 : index
    %4 = vector.load %arg5[%c0, %c0_1, %c0_2] : memref<1x8x128xf32, #tpu.memory_space<vmem>>, vector<1x8x128xf32>
    %5 = vector.shape_cast %4 : vector<1x8x128xf32> to vector<8x128xf32>
    %c0_3 = arith.constant 0 : index
    %c128 = arith.constant 128 : index
    %6 = vector.load %arg6[%c0_3, %c128] : memref<128x384xf32, #tpu.memory_space<vmem>>, vector<128x256xf32>
    %cst = arith.constant dense<0.000000e+00> : vector<8x256xf32>
    %7 = tpu.matmul %5, %6, %cst {dimension_numbers = #tpu.dot_dimension_numbers<[1], [0], [0], [1], [0, 0, 1, 1], [], []>} : vector<8x128xf32>, vector<128x256xf32>, vector<8x256xf32> -> vector<8x256xf32>
    %8 = vector.shape_cast %7 : vector<8x256xf32> to vector<1x8x256xf32>
    %c8_i32 = arith.constant 8 : i32
    %9 = arith.muli %arg2, %c8_i32 : i32
    %10 = tpu.iota {dimensions = array<i32: 1>} : vector<1x8x1xi32>
    %11 = vector.broadcast %9 : i32 to vector<1x8x1xi32>
    %12 = arith.addi %11, %10 : vector<1x8x1xi32>
    %13 = tpu.iota {dimensions = array<i32: 0>} : vector<1x8x1xi32>
    %c0_i32_4 = arith.constant 0 : i32
    %14 = vector.broadcast %c0_i32_4 : i32 to vector<1x8x1xi32>
    %c0_i32_5 = arith.constant 0 : i32
    %15 = vector.broadcast %c0_i32_5 : i32 to vector<1x8x1xi32>
    %16 = arith.cmpi eq, %13, %15 : vector<1x8x1xi32>
    %c0_i32_6 = arith.constant 0 : i32
    %17 = arith.addi %0, %c0_i32_6 : i32
    %18 = arith.index_cast %17 : i32 to index
    %19 = memref.load %arg3[%18] : memref<2xi32, #tpu.memory_space<smem>>
    %20 = vector.broadcast %19 : i32 to vector<1x8x1xi32>
    %21 = arith.select %16, %20, %14 : vector<1x8x1xi1>, vector<1x8x1xi32>
    %22 = arith.cmpi sge, %12, %21 : vector<1x8x1xi32>
    %23 = vector.extract_strided_slice %8 {offsets = [0, 0, 0], sizes = [1, 8, 128], strides = [1, 1, 1]} : vector<1x8x256xf32> to vector<1x8x128xf32>
    %cst_7 = arith.constant 0.000000e+00 : f32
    %24 = vector.shape_cast %22 : vector<1x8x1xi1> to vector<1x8x1xi1>
    %25 = vector.broadcast %24 : vector<1x8x1xi1> to vector<1x8x128xi1>
    %26 = vector.broadcast %cst_7 : f32 to vector<1x8x128xf32>
    %27 = arith.select %25, %26, %23 : vector<1x8x128xi1>, vector<1x8x128xf32>
    %28 = vector.extract_strided_slice %8 {offsets = [0, 0, 128], sizes = [1, 8, 128], strides = [1, 1, 1]} : vector<1x8x256xf32> to vector<1x8x128xf32>
    %c0_8 = arith.constant 0 : index
    %c0_9 = arith.constant 0 : index
    %c0_10 = arith.constant 0 : index
    %29 = vector.load %arg8[%c0_8, %c0_9, %c0_10] : memref<1x8x128xf32, #tpu.memory_space<vmem>>, vector<1x8x128xf32>
    "tpu.trace_start"() <{level = 10 : i32, message = "bqh,bkh->bqk"}> : () -> ()
    %cst_11 = arith.constant dense<0.000000e+00> : vector<1x8x8xf32>
    %30 = tpu.matmul %29, %27, %cst_11 {dimension_numbers = #tpu.dot_dimension_numbers<[2], [2], [1], [1], [0, 0, 0, 1, 1, 1], [0], [0]>} : vector<1x8x128xf32>, vector<1x8x128xf32>, vector<1x8x8xf32> -> vector<1x8x8xf32>
    "tpu.trace_stop"() : () -> ()
    %c0_12 = arith.constant 0 : index
    %c0_13 = arith.constant 0 : index
    %c0_14 = arith.constant 0 : index
    %31 = vector.load %arg9[%c0_12, %c0_13, %c0_14] : memref<1x8x1xf32, #tpu.memory_space<vmem>>, vector<1x8x1xf32>
    %cst_15 = arith.constant dense<0xFF800000> : vector<1x8xf32>
    %32 = vector.multi_reduction <maximumf>, %30, %cst_15 [2] : vector<1x8x8xf32> to vector<1x8xf32>
    %33 = vector.shape_cast %32 : vector<1x8xf32> to vector<1x8x1xf32>
    %34 = arith.maximumf %31, %33 : vector<1x8x1xf32>
    %35 = arith.subf %31, %34 : vector<1x8x1xf32>
    %36 = math.exp %35 : vector<1x8x1xf32>
    %37 = vector.broadcast %34 : vector<1x8x1xf32> to vector<1x8x8xf32>
    %38 = arith.subf %30, %37 : vector<1x8x8xf32>
    %39 = math.exp %38 : vector<1x8x8xf32>
    %c0_16 = arith.constant 0 : index
    %c0_17 = arith.constant 0 : index
    %c0_18 = arith.constant 0 : index
    %40 = vector.load %arg10[%c0_16, %c0_17, %c0_18] : memref<1x8x1xf32, #tpu.memory_space<vmem>>, vector<1x8x1xf32>
    %41 = arith.mulf %36, %40 : vector<1x8x1xf32>
    %cst_19 = arith.constant dense<0.000000e+00> : vector<1x8xf32>
    %42 = vector.multi_reduction <add>, %39, %cst_19 [2] : vector<1x8x8xf32> to vector<1x8xf32>
    %43 = vector.shape_cast %42 : vector<1x8xf32> to vector<1x8x1xf32>
    %44 = arith.addf %41, %43 : vector<1x8x1xf32>
    %c0_20 = arith.constant 0 : index
    %c0_21 = arith.constant 0 : index
    %c0_22 = arith.constant 0 : index
    %45 = vector.load %arg10[%c0_20, %c0_21, %c0_22] : memref<1x8x1xf32, #tpu.memory_space<vmem>>, vector<1x8x1xf32>
    tpu.vector_store %arg10[%c0_20, %c0_21, %c0_22], %44 {strides = array<i32>} : memref<1x8x1xf32, #tpu.memory_space<vmem>>, vector<1x8x1xf32>,
    %c0_23 = arith.constant 0 : index
    %c0_24 = arith.constant 0 : index
    %c0_25 = arith.constant 0 : index
    %46 = vector.load %arg11[%c0_23, %c0_24, %c0_25] : memref<1x8x128xf32, #tpu.memory_space<vmem>>, vector<1x8x128xf32>
    %47 = vector.broadcast %36 : vector<1x8x1xf32> to vector<1x8x128xf32>
    %48 = arith.mulf %47, %46 : vector<1x8x128xf32>
    "tpu.trace_start"() <{level = 10 : i32, message = "bqk,bkh->bqh"}> : () -> ()
    %cst_26 = arith.constant dense<0.000000e+00> : vector<1x8x128xf32>
    %49 = tpu.matmul %39, %28, %cst_26 {dimension_numbers = #tpu.dot_dimension_numbers<[2], [1], [1], [2], [0, 0, 0, 1, 1, 2], [0], [0]>} : vector<1x8x8xf32>, vector<1x8x128xf32>, vector<1x8x128xf32> -> vector<1x8x128xf32>
    "tpu.trace_stop"() : () -> ()
    %50 = arith.addf %48, %49 : vector<1x8x128xf32>
    %c0_27 = arith.constant 0 : index
    %c0_28 = arith.constant 0 : index
    %c0_29 = arith.constant 0 : index
    %51 = vector.load %arg11[%c0_27, %c0_28, %c0_29] : memref<1x8x128xf32, #tpu.memory_space<vmem>>, vector<1x8x128xf32>
    tpu.vector_store %arg11[%c0_27, %c0_28, %c0_29], %50 {strides = array<i32>} : memref<1x8x128xf32, #tpu.memory_space<vmem>>, vector<1x8x128xf32>,
    %c0_30 = arith.constant 0 : index
    %c0_31 = arith.constant 0 : index
    %c0_32 = arith.constant 0 : index
    %52 = vector.load %arg9[%c0_30, %c0_31, %c0_32] : memref<1x8x1xf32, #tpu.memory_space<vmem>>, vector<1x8x1xf32>
    tpu.vector_store %arg9[%c0_30, %c0_31, %c0_32], %34 {strides = array<i32>} : memref<1x8x1xf32, #tpu.memory_space<vmem>>, vector<1x8x1xf32>,
    %c0_i32_33 = arith.constant 0 : i32
    %53 = arith.cmpi eq, %arg2, %c0_i32_33 : i32
    %54 = arith.extui %53 : i1 to i32
    %c0_i32_34 = arith.constant 0 : i32
    %55 = arith.cmpi ne, %54, %c0_i32_34 : i32
    scf.if %55 {
      %c0_35 = arith.constant 0 : index
      %c0_36 = arith.constant 0 : index
      %c0_37 = arith.constant 0 : index
      %56 = vector.load %arg11[%c0_35, %c0_36, %c0_37] : memref<1x8x128xf32, #tpu.memory_space<vmem>>, vector<1x8x128xf32>
      %c0_38 = arith.constant 0 : index
      %c0_39 = arith.constant 0 : index
      %c0_40 = arith.constant 0 : index
      %57 = vector.load %arg10[%c0_38, %c0_39, %c0_40] : memref<1x8x1xf32, #tpu.memory_space<vmem>>, vector<1x8x1xf32>
      %58 = vector.broadcast %57 : vector<1x8x1xf32> to vector<1x8x128xf32>
      %59 = arith.divf %56, %58 : vector<1x8x128xf32>
      %c0_41 = arith.constant 0 : index
      %c0_42 = arith.constant 0 : index
      %c0_43 = arith.constant 0 : index
      %60 = vector.load %arg7[%c0_41, %c0_42, %c0_43] : memref<1x8x128xf32, #tpu.memory_space<vmem>>, vector<1x8x128xf32>
      tpu.vector_store %arg7[%c0_41, %c0_42, %c0_43], %59 {strides = array<i32>} : memref<1x8x128xf32, #tpu.memory_space<vmem>>, vector<1x8x128xf32>,
    } else {
    }
    return
  }
  func.func @transform_0(%arg0: i32, %arg1: i32, %arg2: i32, %arg3: memref<2xi32, #tpu.memory_space<smem>>) -> (i32, i32, i32) {
    %c0_i32 = arith.constant 0 : i32
    %c0_i32_0 = arith.constant 0 : i32
    return %arg0, %arg1, %c0_i32 : i32, i32, i32
  }
  func.func @transform_1(%arg0: i32, %arg1: i32, %arg2: i32, %arg3: memref<2xi32, #tpu.memory_space<smem>>) -> (i32, i32, i32) {
    %c0_i32 = arith.constant 0 : i32
    %c0_i32_0 = arith.constant 0 : i32
    return %arg0, %arg2, %c0_i32 : i32, i32, i32
  }
  func.func @transform_2(%arg0: i32, %arg1: i32, %arg2: i32, %arg3: memref<2xi32, #tpu.memory_space<smem>>) -> (i32, i32) {
    %c0_i32 = arith.constant 0 : i32
    %c0_i32_0 = arith.constant 0 : i32
    %c0_i32_1 = arith.constant 0 : i32
    return %c0_i32, %c0_i32_0 : i32, i32
  }
  func.func @transform_3(%arg0: i32, %arg1: i32, %arg2: i32, %arg3: memref<2xi32, #tpu.memory_space<smem>>) -> (i32, i32, i32) {
    %c0_i32 = arith.constant 0 : i32
    %c0_i32_0 = arith.constant 0 : i32
    return %arg0, %arg1, %c0_i32 : i32, i32, i32
  }
}

</mosaic_0001>

<llo_original>
// kernel: tpu_custom_call.1
$region0: #{tpu_custom_call.1}
  #allocation0 [shape = 'u32[]', space=smem, size = 0x4, offset = 0x4, fixed_abs, tag = 'smem constant byte address 0x4 - core index']
  #allocation1 [shape = 'u32[144,128]{1,0:T(1,128)}', space=vmem, size = 0x12000, scoped, tag = 'internal scratch']
  #allocation2 [shape = 'f32[1,8,128]{2,1,0:T(8,128)}', space=vmem, size = 0x1000, scoped, tag = 'scratch operand']
  #allocation3 [shape = 'f32[1,8,1]{2,1,0:T(8,128)}', space=vmem, size = 0x1000, scoped, tag = 'scratch operand']
  #allocation4 [shape = 'f32[1,8,1]{2,1,0:T(8,128)}', space=vmem, size = 0x1000, scoped, tag = 'scratch operand']
  #allocation5 [shape = 'f32[1,8,128]{2,1,0:T(8,128)}', space=vmem, size = 0x1000, scoped, tag = 'scratch operand']
  #allocation6 [shape = 's32[1]{0}', space=sflag, size = 0x4, scoped, tag = 'scoped memory for tpu_custom_call.1']
  #allocation7 [shape = 'u8[512]{0}', space=smem, size = 0x200, scoped, tag = 'prefetched SMEM operand 0']
  %s0 = inlined_call_operand.hbm [shape: s32[2], index: 0, kind: input, shape index: {}]
  %s1 = inlined_call_operand.hbm [shape: f32[2,8,128], index: 1, kind: input, shape index: {}]
  %s2 = inlined_call_operand.hbm [shape: f32[2,8,128], index: 2, kind: input, shape index: {}]
  %s3 = inlined_call_operand.hbm [shape: f32[128,384], index: 3, kind: input, shape index: {}]
  %s4 = inlined_call_operand.hbm [shape: f32[2,8,128], index: 4, kind: output, shape index: {}]
  %s5 = sld [smem:[#allocation0]]
  $region65: #{tpu_custom_call.1} parent=0
    _
  %s7 = ssub.s32 1, %s5
  %s8 = scalar_select 0, %s7, %s5
  %10 = dma.hbm_to_smem %s0, 16, [#allocation7], [#allocation6]
  %11 = dma.done [#allocation6], 16
  %12 = sfence
  $region1: #{tpu_custom_call.1} parent=0
    #allocation8 [shape = 'u8[8192]{0}', space=vmem, size = 0x2000, scoped, tag = 'input window, operand 1']
    #allocation9 [shape = 's32[2]{0}', space=sflag, size = 0x8, scoped, tag = 'scoped memory for tpu_custom_call.1']
    #allocation10 [shape = 's32[2]{0}', space=sflag, size = 0x8, scoped, tag = 'scoped memory for tpu_custom_call.1']
    #allocation11 [shape = 'u8[8192]{0}', space=vmem, size = 0x2000, scoped, tag = 'input window, operand 2']
    #allocation12 [shape = 's32[2]{0}', space=sflag, size = 0x8, scoped, tag = 'scoped memory for tpu_custom_call.1']
    #allocation13 [shape = 'u8[196608]{0}', space=vmem, size = 0x30000, scoped, tag = 'input window, operand 3, single buffered']
    #allocation14 [shape = 'u8[8192]{0}', space=vmem, size = 0x2000, scoped, tag = 'output window, operand 0']
    %13 = vsyncpa [#allocation9], 0
    %s14 = scalar_lea.sflag [#allocation9], 1
    %15 = vsyncpa %s14, 0
    %16 = vsyncpa [#allocation12], 0
    %s17 = scalar_lea.sflag [#allocation12], 1
    %18 = vsyncpa %s17, 0
    %19 = vsyncpa [#allocation10], 0
    %s20 = scalar_lea.sflag [#allocation10], 1
    %21 = vsyncpa %s20, 0
    loop: start=0, step=1, limit=4
    $region2: #{tpu_custom_call.1} parent=1 // loop_pre_header
      _
    $region3: #{tpu_custom_call.1} parent=1 // loop_header
      %s23 = sphi 0, %s27
      %p24 = scmp.ge.s32.totalorder %s23, 4
      %s30 = sphi 0, %s49
      %s31 = sphi 0, %s45
      %s32 = sphi 0, %s41
      %s33 = sphi 0, %s30
      %s34 = sphi 0, %s31
      %s35 = sphi 0, %s32
      %s36 = sphi 0, %s33
      %s37 = sphi 0, %s34
      %s38 = sphi 0, %s35
      %s54 = sphi 0, %s56
      %s57 = sphi 0, %s54
      %s58 = sphi 0, %s57
      %s74 = sphi 0, %s58
      %s82 = sphi 0, %s84
      %s85 = sphi 0, %s82
      %s86 = sphi 0, %s85
      %s102 = sphi 0, %s86
      %s106 = sphi 0, %s106
      %s108 = sphi 0, %s106
      %s109 = sphi 0, %s108
      %s123 = sphi 0, %s109
      %s131 = sphi 0, %s133
      %s134 = sphi 0, %s131
      %s135 = sphi 0, %s134
      %s151 = sphi 0, %s135
    $region4: #{tpu_custom_call.1} parent=1 // loop_header_branch
      %26 = sbr.rel (%p24) target = $region8
    $region5: #{tpu_custom_call.1} parent=1 // loop_body
      %s28 = ssub.s32 %s23, 1
      %s29 = ssub.s32 %s23, 2
      %s39 = sadd.s32 1, %s32
      %p40 = scmp.ge.s32.totalorder %s39, 1
      %s41 = scalar_select %p40, 0, %s39
      %s42 = sadd.s32 1, %s31
      %s43 = scalar_select %p40, %s42, %s31
      %p44 = scmp.ge.s32.totalorder %s43, 1
      %s45 = scalar_select %p44, 0, %s43
      %s46 = sadd.s32 1, %s30
      %s47 = scalar_select %p44, %s46, %s30
      %p48 = scmp.ge.s32.totalorder %s47, 2
      %s49 = scalar_select %p48, 0, %s47
      %s50 = ssub.s32 %s30, %s49
      %s51 = ssub.s32 %s31, %s45
      %s52 = sor.u32 %s50, %s51
      %p53 = scmp.eq.s32.totalorder %s52, 0
      %s55 = sadd.s32 %s54, 1
      %s56 = scalar_select %p53, %s54, %s55
      %p59 = pneg %p53
      %p60 = scmp.eq.s32.totalorder %s23, 1
      %p61 = por %p59, %p60
      %p62 = scmp.ne.s32.totalorder %s54, %s57
      %p63 = scmp.eq.s32.totalorder %s23, 0
      %p64 = por %p62, %p63
      %p65 = scmp.ne.s32.totalorder %s54, %s57
      %p66 = scmp.eq.s32.totalorder %s28, 1
      %p67 = por %p65, %p66
      %p68 = scmp.ne.s32.totalorder %s57, %s58
      %p69 = scmp.eq.s32.totalorder %s28, 0
      %p70 = por %p68, %p69
      %p71 = scmp.ne.s32.totalorder %s57, %s58
      %p72 = scmp.eq.s32.totalorder %s29, 1
      %p73 = por %p71, %p72
      %p75 = scmp.ne.s32.totalorder %s58, %s74
      %p76 = scmp.eq.s32.totalorder %s29, 0
      %p77 = por %p75, %p76
      %s78 = ssub.s32 %s30, %s49
      %s79 = ssub.s32 %s32, %s41
      %s80 = sor.u32 %s78, %s79
      %p81 = scmp.eq.s32.totalorder %s80, 0
      %s83 = sadd.s32 %s82, 1
      %s84 = scalar_select %p81, %s82, %s83
      %p87 = pneg %p81
      %p88 = scmp.eq.s32.totalorder %s23, 1
      %p89 = por %p87, %p88
      %p90 = scmp.ne.s32.totalorder %s82, %s85
      %p91 = scmp.eq.s32.totalorder %s23, 0
      %p92 = por %p90, %p91
      %p93 = scmp.ne.s32.totalorder %s82, %s85
      %p94 = scmp.eq.s32.totalorder %s28, 1
      %p95 = por %p93, %p94
      %p96 = scmp.ne.s32.totalorder %s85, %s86
      %p97 = scmp.eq.s32.totalorder %s28, 0
      %p98 = por %p96, %p97
      %p99 = scmp.ne.s32.totalorder %s85, %s86
      %p100 = scmp.eq.s32.totalorder %s29, 1
      %p101 = por %p99, %p100
      %p103 = scmp.ne.s32.totalorder %s86, %s102
      %p104 = scmp.eq.s32.totalorder %s29, 0
      %p105 = por %p103, %p104
      %s107 = sadd.s32 %s106, 1
      %p110 = scmp.eq.s32.totalorder %s23, 1
      %p111 = scmp.ne.s32.totalorder %s106, %s108
      %p112 = scmp.eq.s32.totalorder %s23, 0
      %p113 = por %p111, %p112
      %p114 = scmp.ne.s32.totalorder %s106, %s108
      %p115 = scmp.eq.s32.totalorder %s28, 1
      %p116 = por %p114, %p115
      %p117 = scmp.ne.s32.totalorder %s108, %s109
      %p118 = scmp.eq.s32.totalorder %s28, 0
      %p119 = por %p117, %p118
      %p120 = scmp.ne.s32.totalorder %s108, %s109
      %p121 = scmp.eq.s32.totalorder %s29, 1
      %p122 = por %p120, %p121
      %p124 = scmp.ne.s32.totalorder %s109, %s123
      %p125 = scmp.eq.s32.totalorder %s29, 0
      %p126 = por %p124, %p125
      %s127 = ssub.s32 %s30, %s49
      %s128 = ssub.s32 %s31, %s45
      %s129 = sor.u32 %s127, %s128
      %p130 = scmp.eq.s32.totalorder %s129, 0
      %s132 = sadd.s32 %s131, 1
      %s133 = scalar_select %p130, %s131, %s132
      %p136 = pneg %p130
      %p137 = scmp.eq.s32.totalorder %s23, 1
      %p138 = por %p136, %p137
      %p139 = scmp.ne.s32.totalorder %s131, %s134
      %p140 = scmp.eq.s32.totalorder %s23, 0
      %p141 = por %p139, %p140
      %p142 = scmp.ne.s32.totalorder %s131, %s134
      %p143 = scmp.eq.s32.totalorder %s28, 1
      %p144 = por %p142, %p143
      %p145 = scmp.ne.s32.totalorder %s134, %s135
      %p146 = scmp.eq.s32.totalorder %s28, 0
      %p147 = por %p145, %p146
      %p148 = scmp.ne.s32.totalorder %s134, %s135
      %p149 = scmp.eq.s32.totalorder %s29, 1
      %p150 = por %p148, %p149
      %p152 = scmp.ne.s32.totalorder %s135, %s151
      %p153 = scmp.eq.s32.totalorder %s29, 0
      %p154 = por %p152, %p153
      %p155 = scmp.le.s32.totalorder 1, %s23
      %p156 = scmp.lt.s32.totalorder %s23, 3
      %p157 = pnand %p155, %p156
      %p158 = pneg %p157
      // Predicated region
      $region9: #{tpu_custom_call.1} parent=5 // pred_check
        _
      $region10: #{tpu_custom_call.1} parent=5 // pred_check_branch
        %160 = sbr.rel (%p157) target = $region12
      $region11: #{tpu_custom_call.1} parent=5 // pred_region
        %s161 = ssub.s32 %s23, 1
        // Predicated region
        $region13: #{tpu_custom_call.1} parent=11 // pred_check
          %p162 = pneg %p119
        $region14: #{tpu_custom_call.1} parent=11 // pred_check_branch
          %164 = sbr.rel (%p162) target = $region16
        $region15: #{tpu_custom_call.1} parent=11 // pred_region
          %s166 = ssub.s32 6144, 6144
          %167 = vsyncadd [#allocation12], %s166
          %s168 = sshll.u32 [#allocation13], 4
          %s169 = int_to_ptr.vmem [resolvable:$true] %s168
          %174 = dma.hbm_to_vmem [thread:$0]  %s3, 6144, %s169, [#allocation12], 384, 384, 24
        $region16: #{tpu_custom_call.1} parent=11 // pred_fallthru
          _
      $region12: #{tpu_custom_call.1} parent=5 // pred_fallthru
        _
      %p175 = scmp.lt.s32.totalorder %s23, 2
      // Predicated region
      $region17: #{tpu_custom_call.1} parent=5 // pred_check
        %p176 = pneg %p175
      $region18: #{tpu_custom_call.1} parent=5 // pred_check_branch
        %178 = sbr.rel (%p176) target = $region20
      $region19: #{tpu_custom_call.1} parent=5 // pred_region
        // Predicated region
        $region21: #{tpu_custom_call.1} parent=19 // pred_check
          %p179 = pneg %p64
        $region22: #{tpu_custom_call.1} parent=19 // pred_check_branch
          %181 = sbr.rel (%p179) target = $region24
        $region23: #{tpu_custom_call.1} parent=19 // pred_region
          %s182 = sand.u32 %s54, 1
          %s183 = scalar_lea.sflag [#allocation9], %s182
          %s184 = sand.u32 %s54, 1
          %s185 = smul.addr %s184, 8
          %s186 = scalar_lea.vmem [#allocation8], %s185
          %s188 = ssub.s32 128, 128
          %189 = vsyncadd %s183, %s188
          %s190 = sadd.s32 %s31, %s30
          %s191 = smul.addr %s190, 128
          %s192 = scalar_lea.hbm %s1, %s191
          %s194 = sshll.u32 %s186, 4
          %s195 = int_to_ptr.vmem [resolvable:$true] %s194
          %197 = dma.hbm_to_vmem [thread:$0]  %s192, 128, %s195, %s183
        $region24: #{tpu_custom_call.1} parent=19 // pred_fallthru
          _
        // Predicated region
        $region25: #{tpu_custom_call.1} parent=19 // pred_check
          %p198 = pneg %p92
        $region26: #{tpu_custom_call.1} parent=19 // pred_check_branch
          %200 = sbr.rel (%p198) target = $region28
        $region27: #{tpu_custom_call.1} parent=19 // pred_region
          %s201 = sand.u32 %s23, 1
          %s202 = scalar_lea.sflag [#allocation12], %s201
          %s203 = sand.u32 %s82, 1
          %s204 = smul.addr %s203, 8
          %s205 = scalar_lea.vmem [#allocation11], %s204
          %s207 = ssub.s32 128, 128
          %208 = vsyncadd %s202, %s207
          %s209 = sadd.s32 %s32, %s30
          %s210 = smul.addr %s209, 128
          %s211 = scalar_lea.hbm %s2, %s210
          %s213 = sshll.u32 %s205, 4
          %s214 = int_to_ptr.vmem [resolvable:$true] %s213
          %216 = dma.hbm_to_vmem [thread:$0]  %s211, 128, %s214, %s202
        $region28: #{tpu_custom_call.1} parent=19 // pred_fallthru
          _
      $region20: #{tpu_custom_call.1} parent=5 // pred_fallthru
        _
      %p217 = scmp.le.s32.totalorder 1, %s23
      %p218 = scmp.lt.s32.totalorder %s23, 3
      %p219 = pnand %p217, %p218
      %p220 = pneg %p219
      // Predicated region
      $region29: #{tpu_custom_call.1} parent=5 // pred_check
        _
      $region30: #{tpu_custom_call.1} parent=5 // pred_check_branch
        %222 = sbr.rel (%p219) target = $region32
      $region31: #{tpu_custom_call.1} parent=5 // pred_region
        %s223 = ssub.s32 %s23, 1
        %s224 = sand.u32 %s57, 1
        %s225 = scalar_lea.sflag [#allocation9], %s224
        %s226 = sand.u32 %s57, 1
        %s227 = smul.addr %s226, 8
        %s228 = scalar_lea.vmem [#allocation8], %s227
        // Predicated region
        $region33: #{tpu_custom_call.1} parent=31 // pred_check
          %p229 = pneg %p70
        $region34: #{tpu_custom_call.1} parent=31 // pred_check_branch
          %231 = sbr.rel (%p229) target = $region36
        $region35: #{tpu_custom_call.1} parent=31 // pred_region
          %232 = dma.done %s225, 128
        $region36: #{tpu_custom_call.1} parent=31 // pred_fallthru
          _
        %s233 = sand.u32 %s28, 1
        %s234 = scalar_lea.sflag [#allocation12], %s233
        %s235 = sand.u32 %s85, 1
        %s236 = smul.addr %s235, 8
        %s237 = scalar_lea.vmem [#allocation11], %s236
        // Predicated region
        $region37: #{tpu_custom_call.1} parent=31 // pred_check
          %p238 = pneg %p98
        $region38: #{tpu_custom_call.1} parent=31 // pred_check_branch
          %240 = sbr.rel (%p238) target = $region40
        $region39: #{tpu_custom_call.1} parent=31 // pred_region
          %241 = dma.done %s234, 128
        $region40: #{tpu_custom_call.1} parent=31 // pred_fallthru
          _
        // Predicated region
        $region41: #{tpu_custom_call.1} parent=31 // pred_check
          %p242 = pneg %p119
        $region42: #{tpu_custom_call.1} parent=31 // pred_check_branch
          %244 = sbr.rel (%p242) target = $region44
        $region43: #{tpu_custom_call.1} parent=31 // pred_region
          %245 = dma.done [#allocation12], 6144
        $region44: #{tpu_custom_call.1} parent=31 // pred_fallthru
          _
        %s246 = sand.u32 %s57, 1
        %s247 = scalar_lea.sflag [#allocation9], %s246
        %s248 = sand.u32 %s57, 1
        %s249 = smul.addr %s248, 8
        %s250 = scalar_lea.vmem [#allocation8], %s249
        %p251 = pneg %p70
        %p252 = pneg %p67
        %s253 = sand.u32 %s28, 1
        %s254 = scalar_lea.sflag [#allocation12], %s253
        %s255 = sand.u32 %s85, 1
        %s256 = smul.addr %s255, 8
        %s257 = scalar_lea.vmem [#allocation11], %s256
        %p258 = pneg %p98
        %p259 = pneg %p95
        %p260 = pneg %p119
        %p261 = pneg %p116
        %p262 = pneg %p147
        %p263 = pneg %p144
        %s264 = sand.u32 %s134, 1
        %s265 = scalar_lea.sflag [#allocation10], %s264
        %s266 = sand.u32 %s134, 1
        %s267 = smul.addr %s266, 8
        %s268 = scalar_lea.vmem [#allocation14], %s267
        %p269 = scmp.eq.s32.totalorder %s35, 0
        // Predicated region
        $region45: #{tpu_custom_call.1} parent=31 // pred_check
          %p270 = pneg %p269
        $region46: #{tpu_custom_call.1} parent=31 // pred_check_branch
          %272 = sbr.rel (%p270) target = $region48
        $region47: #{tpu_custom_call.1} parent=31 // pred_region
          %v273 = vld [vmem:[%s228] sm:$0xff]
          %v274 = vld [vmem:[#allocation13] sm:$0xff]
          %v275 = vld [vmem:[#allocation13 + $0x18] sm:$0xff]
          %v276 = vld [vmem:[#allocation13 + $0x30] sm:$0xff]
          %v277 = vld [vmem:[#allocation13 + $0x48] sm:$0xff]
          %v278 = vld [vmem:[#allocation13 + $0x60] sm:$0xff]
          %v279 = vld [vmem:[#allocation13 + $0x78] sm:$0xff]
          %v280 = vld [vmem:[#allocation13 + $0x90] sm:$0xff]
          %v281 = vld [vmem:[#allocation13 + $0xa8] sm:$0xff]
          %v282 = vld [vmem:[#allocation13 + $0xc0] sm:$0xff]
          %v283 = vld [vmem:[#allocation13 + $0xd8] sm:$0xff]
          %v284 = vld [vmem:[#allocation13 + $0xf0] sm:$0xff]
          %v285 = vld [vmem:[#allocation13 + $0x108] sm:$0xff]
          %v286 = vld [vmem:[#allocation13 + $0x120] sm:$0xff]
          %v287 = vld [vmem:[#allocation13 + $0x138] sm:$0xff]
          %v288 = vld [vmem:[#allocation13 + $0x150] sm:$0xff]
          %v289 = vld [vmem:[#allocation13 + $0x168] sm:$0xff]
          %290 = vmatprep.subr.mxu0 0.0
          %291 = vmatpush1.msra.mxu0 %v289
          %292 = vmatprep.subr.mxu0 0.0
          %293 = vmatpush1.msra.mxu0 %v288
          %294 = vmatprep.subr.mxu0 0.0
          %295 = vmatpush1.msra.mxu0 %v287
          %296 = vmatprep.subr.mxu0 0.0
          %297 = vmatpush1.msra.mxu0 %v286
          %298 = vmatprep.subr.mxu0 0.0
          %299 = vmatpush1.msra.mxu0 %v285
          %300 = vmatprep.subr.mxu0 0.0
          %301 = vmatpush1.msra.mxu0 %v284
          %302 = vmatprep.subr.mxu0 0.0
          %303 = vmatpush1.msra.mxu0 %v283
          %304 = vmatprep.subr.mxu0 0.0
          %305 = vmatpush1.msra.mxu0 %v282
          %306 = vmatprep.subr.mxu0 0.0
          %307 = vmatpush1.msra.mxu0 %v281
          %308 = vmatprep.subr.mxu0 0.0
          %309 = vmatpush1.msra.mxu0 %v280
          %310 = vmatprep.subr.mxu0 0.0
          %311 = vmatpush1.msra.mxu0 %v279
          %312 = vmatprep.subr.mxu0 0.0
          %313 = vmatpush1.msra.mxu0 %v278
          %314 = vmatprep.subr.mxu0 0.0
          %315 = vmatpush1.msra.mxu0 %v277
          %316 = vmatprep.subr.mxu0 0.0
          %317 = vmatpush1.msra.mxu0 %v276
          %318 = vmatprep.subr.mxu0 0.0
          %319 = vmatpush1.msra.mxu0 %v275
          %320 = vmatprep.subr.mxu0 0.0
          %321 = vmatpush1.msra.mxu0 %v274
          %322 = vmatprep.subr.mxu0 0.0
          %323 = vmatpush2.msra.mxu0 0.0
          %324 = vmatprep.subr.mxu0 0.0
          %325 = vmatpush2.msra.mxu0 0.0
          %326 = vmatprep.subr.mxu0 0.0
          %327 = vmatpush2.msra.mxu0 0.0
          %328 = vmatprep.subr.mxu0 0.0
          %329 = vmatpush2.msra.mxu0 0.0
          %330 = vmatprep.subr.mxu0 0.0
          %331 = vmatpush2.msra.mxu0 0.0
          %332 = vmatprep.subr.mxu0 0.0
          %333 = vmatpush2.msra.mxu0 0.0
          %334 = vmatprep.subr.mxu0 0.0
          %335 = vmatpush2.msra.mxu0 0.0
          %336 = vmatprep.subr.mxu0 0.0
          %337 = vmatpush2.msra.mxu0 0.0
          %338 = vmatprep.subr.mxu0 0.0
          %339 = vmatpush2.msra.mxu0 0.0
          %340 = vmatprep.subr.mxu0 0.0
          %341 = vmatpush2.msra.mxu0 0.0
          %342 = vmatprep.subr.mxu0 0.0
          %343 = vmatpush2.msra.mxu0 0.0
          %344 = vmatprep.subr.mxu0 0.0
          %345 = vmatpush2.msra.mxu0 0.0
          %346 = vmatprep.subr.mxu0 0.0
          %347 = vmatpush2.msra.mxu0 0.0
          %348 = vmatprep.subr.mxu0 0.0
          %349 = vmatpush2.msra.mxu0 0.0
          %350 = vmatprep.subr.mxu0 0.0
          %351 = vmatpush2.msra.mxu0 0.0
          %352 = vmatprep.subr.mxu0 0.0
          %353 = vmatpush2.msra.mxu0 0.0
          %354 = vmatprep.mubr.f32.mxu0 0.0
          %355 = vmatmul.mubr.f32.gmra.mxu0 %v273
          %v356 = vpop.f32.mrf.mxu0
          %v357 = vadd.f32 0.0, %v356
          %v358 = vpop.f32.mrf.mxu0
          %359 = vdwg.mxu0
          %s360 = smul.u32 %s34, 8
          %v361 = vlaneseq
          %v362 = vshrl.u32 %v361, 7
          %v363 = vstv %s360
          %v364 = vadd.s32 %v363, %v362
          %s365 = sld [smem:[#allocation7 + %s33]]
          %v366 = vstv %s365
          %vm367 = vcmp.ge.s32.totalorder %v364, %v366
          %v368 = vsel %vm367, 1, 0
          %vm369 = vcmp.eq.s32.totalorder %v368, 1
          %v370 = vsel %vm369, 0.0, %v357
          %371 = vst [vmem:[#allocation2] sm:$0xff] %v370
          %vm372 = vcmask 7168
          %373 = vst.msk [vmem:[#allocation3] sm:$0xff] %vm372, -inf
          %374 = vst.msk [vmem:[#allocation4] sm:$0xff] %vm372, 0.0
          %375 = vst [vmem:[#allocation5] sm:$0xff] 0.0
        $region48: #{tpu_custom_call.1} parent=31 // pred_fallthru
          _
        %v376 = vld [vmem:[%s237] sm:$0xff]
        %v377 = vld [vmem:[#allocation13 + $0x8] sm:$0xff]
        %v378 = vld [vmem:[#allocation13 + $0x10] sm:$0xff]
        %v379 = vld [vmem:[#allocation13 + $0x20] sm:$0xff]
        %v380 = vld [vmem:[#allocation13 + $0x28] sm:$0xff]
        %v381 = vld [vmem:[#allocation13 + $0x38] sm:$0xff]
        %v382 = vld [vmem:[#allocation13 + $0x40] sm:$0xff]
        %v383 = vld [vmem:[#allocation13 + $0x50] sm:$0xff]
        %v384 = vld [vmem:[#allocation13 + $0x58] sm:$0xff]
        %v385 = vld [vmem:[#allocation13 + $0x68] sm:$0xff]
        %v386 = vld [vmem:[#allocation13 + $0x70] sm:$0xff]
        %v387 = vld [vmem:[#allocation13 + $0x80] sm:$0xff]
        %v388 = vld [vmem:[#allocation13 + $0x88] sm:$0xff]
        %v389 = vld [vmem:[#allocation13 + $0x98] sm:$0xff]
        %v390 = vld [vmem:[#allocation13 + $0xa0] sm:$0xff]
        %v391 = vld [vmem:[#allocation13 + $0xb0] sm:$0xff]
        %v392 = vld [vmem:[#allocation13 + $0xb8] sm:$0xff]
        %v393 = vld [vmem:[#allocation13 + $0xc8] sm:$0xff]
        %v394 = vld [vmem:[#allocation13 + $0xd0] sm:$0xff]
        %v395 = vld [vmem:[#allocation13 + $0xe0] sm:$0xff]
        %v396 = vld [vmem:[#allocation13 + $0xe8] sm:$0xff]
        %v397 = vld [vmem:[#allocation13 + $0xf8] sm:$0xff]
        %v398 = vld [vmem:[#allocation13 + $0x100] sm:$0xff]
        %v399 = vld [vmem:[#allocation13 + $0x110] sm:$0xff]
        %v400 = vld [vmem:[#allocation13 + $0x118] sm:$0xff]
        %v401 = vld [vmem:[#allocation13 + $0x128] sm:$0xff]
        %v402 = vld [vmem:[#allocation13 + $0x130] sm:$0xff]
        %v403 = vld [vmem:[#allocation13 + $0x140] sm:$0xff]
        %v404 = vld [vmem:[#allocation13 + $0x148] sm:$0xff]
        %v405 = vld [vmem:[#allocation13 + $0x158] sm:$0xff]
        %v406 = vld [vmem:[#allocation13 + $0x160] sm:$0xff]
        %v407 = vld [vmem:[#allocation13 + $0x170] sm:$0xff]
        %v408 = vld [vmem:[#allocation13 + $0x178] sm:$0xff]
        %409 = vmatprep.subr.mxu0 %v408
        %410 = vmatpush1.msra.mxu0 %v407
        %411 = vmatprep.subr.mxu0 %v406
        %412 = vmatpush1.msra.mxu0 %v405
        %413 = vmatprep.subr.mxu0 %v404
        %414 = vmatpush1.msra.mxu0 %v403
        %415 = vmatprep.subr.mxu0 %v402
        %416 = vmatpush1.msra.mxu0 %v401
        %417 = vmatprep.subr.mxu0 %v400
        %418 = vmatpush1.msra.mxu0 %v399
        %419 = vmatprep.subr.mxu0 %v398
        %420 = vmatpush1.msra.mxu0 %v397
        %421 = vmatprep.subr.mxu0 %v396
        %422 = vmatpush1.msra.mxu0 %v395
        %423 = vmatprep.subr.mxu0 %v394
        %424 = vmatpush1.msra.mxu0 %v393
        %425 = vmatprep.subr.mxu0 %v392
        %426 = vmatpush1.msra.mxu0 %v391
        %427 = vmatprep.subr.mxu0 %v390
        %428 = vmatpush1.msra.mxu0 %v389
        %429 = vmatprep.subr.mxu0 %v388
        %430 = vmatpush1.msra.mxu0 %v387
        %431 = vmatprep.subr.mxu0 %v386
        %432 = vmatpush1.msra.mxu0 %v385
        %433 = vmatprep.subr.mxu0 %v384
        %434 = vmatpush1.msra.mxu0 %v383
        %435 = vmatprep.subr.mxu0 %v382
        %436 = vmatpush1.msra.mxu0 %v381
        %437 = vmatprep.subr.mxu0 %v380
        %438 = vmatpush1.msra.mxu0 %v379
        %439 = vmatprep.subr.mxu0 %v378
        %440 = vmatpush1.msra.mxu0 %v377
        %441 = vmatprep.subr.mxu0 0.0
        %442 = vmatpush2.msra.mxu0 0.0
        %443 = vmatprep.subr.mxu0 0.0
        %444 = vmatpush2.msra.mxu0 0.0
        %445 = vmatprep.subr.mxu0 0.0
        %446 = vmatpush2.msra.mxu0 0.0
        %447 = vmatprep.subr.mxu0 0.0
        %448 = vmatpush2.msra.mxu0 0.0
        %449 = vmatprep.subr.mxu0 0.0
        %450 = vmatpush2.msra.mxu0 0.0
        %451 = vmatprep.subr.mxu0 0.0
        %452 = vmatpush2.msra.mxu0 0.0
        %453 = vmatprep.subr.mxu0 0.0
        %454 = vmatpush2.msra.mxu0 0.0
        %455 = vmatprep.subr.mxu0 0.0
        %456 = vmatpush2.msra.mxu0 0.0
        %457 = vmatprep.subr.mxu0 0.0
        %458 = vmatpush2.msra.mxu0 0.0
        %459 = vmatprep.subr.mxu0 0.0
        %460 = vmatpush2.msra.mxu0 0.0
        %461 = vmatprep.subr.mxu0 0.0
        %462 = vmatpush2.msra.mxu0 0.0
        %463 = vmatprep.subr.mxu0 0.0
        %464 = vmatpush2.msra.mxu0 0.0
        %465 = vmatprep.subr.mxu0 0.0
        %466 = vmatpush2.msra.mxu0 0.0
        %467 = vmatprep.subr.mxu0 0.0
        %468 = vmatpush2.msra.mxu0 0.0
        %469 = vmatprep.subr.mxu0 0.0
        %470 = vmatpush2.msra.mxu0 0.0
        %471 = vmatprep.subr.mxu0 0.0
        %472 = vmatpush2.msra.mxu0 0.0
        %473 = vmatprep.mubr.f32.mxu0 0.0
        %474 = vmatmul.mubr.f32.gmra.mxu0 %v376
        %v475 = vpop.f32.mrf.mxu0
        %v476 = vadd.f32 0.0, %v475
        %v477 = vpop.f32.mrf.mxu0
        %v478 = vadd.f32 0.0, %v477
        %479 = vdwg.mxu0
        %s480 = smul.u32 %s35, 8
        %v481 = vlaneseq
        %v482 = vshrl.u32 %v481, 7
        %v483 = vstv %s480
        %v484 = vadd.s32 %v483, %v482
        %s485 = sld [smem:[#allocation7 + %s33]]
        %v486 = vstv %s485
        %vm487 = vcmp.ge.s32.totalorder %v484, %v486
        %v488 = vsel %vm487, 1, 0
        %vm489 = vcmp.eq.s32.totalorder %v488, 1
        %v490 = vsel %vm489, 0.0, %v476
        %v491 = vld [vmem:[#allocation2] sm:$0xff]
        %492 = vmatprep.subr.mxu0 0.0
        %493 = vmatpush1.xpose.msra.mxu0 0.0
        %494 = vmatprep.subr.mxu0 0.0
        %495 = vmatpush1.xpose.msra.mxu0 0.0
        %496 = vmatprep.subr.mxu0 0.0
        %497 = vmatpush1.xpose.msra.mxu0 0.0
        %498 = vmatprep.subr.mxu0 0.0
        %499 = vmatpush1.xpose.msra.mxu0 0.0
        %500 = vmatprep.subr.mxu0 0.0
        %501 = vmatpush1.xpose.msra.mxu0 0.0
        %502 = vmatprep.subr.mxu0 0.0
        %503 = vmatpush1.xpose.msra.mxu0 0.0
        %504 = vmatprep.subr.mxu0 0.0
        %505 = vmatpush1.xpose.msra.mxu0 0.0
        %506 = vmatprep.subr.mxu0 0.0
        %507 = vmatpush1.xpose.msra.mxu0 0.0
        %508 = vmatprep.subr.mxu0 0.0
        %509 = vmatpush1.xpose.msra.mxu0 0.0
        %510 = vmatprep.subr.mxu0 0.0
        %511 = vmatpush1.xpose.msra.mxu0 0.0
        %512 = vmatprep.subr.mxu0 0.0
        %513 = vmatpush1.xpose.msra.mxu0 0.0
        %514 = vmatprep.subr.mxu0 0.0
        %515 = vmatpush1.xpose.msra.mxu0 0.0
        %516 = vmatprep.subr.mxu0 0.0
        %517 = vmatpush1.xpose.msra.mxu0 0.0
        %518 = vmatprep.subr.mxu0 0.0
        %519 = vmatpush1.xpose.msra.mxu0 0.0
        %520 = vmatprep.subr.mxu0 0.0
        %521 = vmatpush1.xpose.msra.mxu0 0.0
        %522 = vmatprep.subr.mxu0 0.0
        %523 = vmatpush1.xpose.msra.mxu0 %v490
        %524 = vmatprep.subr.mxu0 0.0
        %525 = vmatpush2.xpose.msra.mxu0 0.0
        %526 = vmatprep.subr.mxu0 0.0
        %527 = vmatpush2.xpose.msra.mxu0 0.0
        %528 = vmatprep.subr.mxu0 0.0
        %529 = vmatpush2.xpose.msra.mxu0 0.0
        %530 = vmatprep.subr.mxu0 0.0
        %531 = vmatpush2.xpose.msra.mxu0 0.0
        %532 = vmatprep.subr.mxu0 0.0
        %533 = vmatpush2.xpose.msra.mxu0 0.0
        %534 = vmatprep.subr.mxu0 0.0
        %535 = vmatpush2.xpose.msra.mxu0 0.0
        %536 = vmatprep.subr.mxu0 0.0
        %537 = vmatpush2.xpose.msra.mxu0 0.0
        %538 = vmatprep.subr.mxu0 0.0
        %539 = vmatpush2.xpose.msra.mxu0 0.0
        %540 = vmatprep.subr.mxu0 0.0
        %541 = vmatpush2.xpose.msra.mxu0 0.0
        %542 = vmatprep.subr.mxu0 0.0
        %543 = vmatpush2.xpose.msra.mxu0 0.0
        %544 = vmatprep.subr.mxu0 0.0
        %545 = vmatpush2.xpose.msra.mxu0 0.0
        %546 = vmatprep.subr.mxu0 0.0
        %547 = vmatpush2.xpose.msra.mxu0 0.0
        %548 = vmatprep.subr.mxu0 0.0
        %549 = vmatpush2.xpose.msra.mxu0 0.0
        %550 = vmatprep.subr.mxu0 0.0
        %551 = vmatpush2.xpose.msra.mxu0 0.0
        %552 = vmatprep.subr.mxu0 0.0
        %553 = vmatpush2.xpose.msra.mxu0 0.0
        %554 = vmatprep.subr.mxu0 0.0
        %555 = vmatpush2.xpose.msra.mxu0 0.0
        %556 = vmatprep.mubr.f32.mxu0 0.0
        %557 = vmatmul.mubr.f32.gmra.mxu0 %v491
        %v558 = vpop.f32.mrf.mxu0
        %v559 = vadd.f32 0.0, %v558
        %v560 = vpop.f32.mrf.mxu0
        %561 = vdwg.mxu0
        %v562 = vld [vmem:[#allocation3] sm:$0xff]
        %vm563 = vcmask 64512
        %v564 = vsel %vm563, %v559, -inf
        %565 = vmax.xlane.f32.xlu0 %v564
        %v566 = vpop.xlane.xlu0 %565
        %v567 = vmax.f32 %v562, %v566
        %v568 = vsub.f32 %v562, %v567
        %v569 = vmul.f32 %v568, 1.442695
        %v570 = vpow.pop %v569
        %572 = vset.pattern.permute.xlu0 0
        %573 = vperm.xlu0 %572, %v567
        %v574 = vpop.permute.xlu0 %573
        %v576 = vsub.f32 %v559, %v574
        %v577 = vmul.f32 %v576, 1.442695
        %v578 = vpow.pop %v577
        %v579 = vld [vmem:[#allocation4] sm:$0xff]
        %v580 = vmul.f32 %v570, %v579
        %v581 = vsel %vm563, %v578, 0.0
        %582 = vadd.xlane.f32.xlu0 %v581
        %v583 = vpop.xlane.xlu0 %582
        %v584 = vadd.f32 %v580, %v583
        %vm585 = vcmask 7168
        %586 = vst.msk [vmem:[#allocation4] sm:$0xff] %vm585, %v584
        %v587 = vld [vmem:[#allocation5] sm:$0xff]
        %589 = vset.pattern.permute.xlu0 0
        %590 = vperm.xlu0 %589, %v570
        %v591 = vpop.permute.xlu0 %590
        %v593 = vmul.f32 %v591, %v587
        %v595 = vsel %vm563, %v578, 0
        %597 = vmatprep.subr.mxu0 0.0
        %598 = vmatpush1.msra.mxu0 0.0
        %599 = vmatprep.subr.mxu0 0.0
        %600 = vmatpush1.msra.mxu0 0.0
        %601 = vmatprep.subr.mxu0 0.0
        %602 = vmatpush1.msra.mxu0 0.0
        %603 = vmatprep.subr.mxu0 0.0
        %604 = vmatpush1.msra.mxu0 0.0
        %605 = vmatprep.subr.mxu0 0.0
        %606 = vmatpush1.msra.mxu0 0.0
        %607 = vmatprep.subr.mxu0 0.0
        %608 = vmatpush1.msra.mxu0 0.0
        %609 = vmatprep.subr.mxu0 0.0
        %610 = vmatpush1.msra.mxu0 0.0
        %611 = vmatprep.subr.mxu0 0.0
        %612 = vmatpush1.msra.mxu0 0.0
        %613 = vmatprep.subr.mxu0 0.0
        %614 = vmatpush1.msra.mxu0 0.0
        %615 = vmatprep.subr.mxu0 0.0
        %616 = vmatpush1.msra.mxu0 0.0
        %617 = vmatprep.subr.mxu0 0.0
        %618 = vmatpush1.msra.mxu0 0.0
        %619 = vmatprep.subr.mxu0 0.0
        %620 = vmatpush1.msra.mxu0 0.0
        %621 = vmatprep.subr.mxu0 0.0
        %622 = vmatpush1.msra.mxu0 0.0
        %623 = vmatprep.subr.mxu0 0.0
        %624 = vmatpush1.msra.mxu0 0.0
        %625 = vmatprep.subr.mxu0 0.0
        %626 = vmatpush1.msra.mxu0 0.0
        %627 = vmatprep.subr.mxu0 0.0
        %628 = vmatpush1.msra.mxu0 %v478
        %629 = vmatprep.subr.mxu0 0.0
        %630 = vmatpush2.msra.mxu0 0.0
        %631 = vmatprep.subr.mxu0 0.0
        %632 = vmatpush2.msra.mxu0 0.0
        %633 = vmatprep.subr.mxu0 0.0
        %634 = vmatpush2.msra.mxu0 0.0
        %635 = vmatprep.subr.mxu0 0.0
        %636 = vmatpush2.msra.mxu0 0.0
        %637 = vmatprep.subr.mxu0 0.0
        %638 = vmatpush2.msra.mxu0 0.0
        %639 = vmatprep.subr.mxu0 0.0
        %640 = vmatpush2.msra.mxu0 0.0
        %641 = vmatprep.subr.mxu0 0.0
        %642 = vmatpush2.msra.mxu0 0.0
        %643 = vmatprep.subr.mxu0 0.0
        %644 = vmatpush2.msra.mxu0 0.0
        %645 = vmatprep.subr.mxu0 0.0
        %646 = vmatpush2.msra.mxu0 0.0
        %647 = vmatprep.subr.mxu0 0.0
        %648 = vmatpush2.msra.mxu0 0.0
        %649 = vmatprep.subr.mxu0 0.0
        %650 = vmatpush2.msra.mxu0 0.0
        %651 = vmatprep.subr.mxu0 0.0
        %652 = vmatpush2.msra.mxu0 0.0
        %653 = vmatprep.subr.mxu0 0.0
        %654 = vmatpush2.msra.mxu0 0.0
        %655 = vmatprep.subr.mxu0 0.0
        %656 = vmatpush2.msra.mxu0 0.0
        %657 = vmatprep.subr.mxu0 0.0
        %658 = vmatpush2.msra.mxu0 0.0
        %659 = vmatprep.subr.mxu0 0.0
        %660 = vmatpush2.msra.mxu0 0.0
        %661 = vmatprep.mubr.f32.mxu0 0.0
        %662 = vmatmul.mubr.f32.gmra.mxu0 %v595
        %v663 = vpop.f32.mrf.mxu0
        %v664 = vadd.f32 0.0, %v663
        %v665 = vpop.f32.mrf.mxu0
        %666 = vdwg.mxu0
        %v667 = vadd.f32 %v593, %v664
        %668 = vst [vmem:[#allocation5] sm:$0xff] %v667
        %669 = vst.msk [vmem:[#allocation3] sm:$0xff] %vm585, %v567
        // Predicated region
        $region49: #{tpu_custom_call.1} parent=31 // pred_check
          %p670 = pneg %p269
        $region50: #{tpu_custom_call.1} parent=31 // pred_check_branch
          %672 = sbr.rel (%p670) target = $region52
        $region51: #{tpu_custom_call.1} parent=31 // pred_region
          %v673 = vld [vmem:[#allocation5] sm:$0xff]
          %v674 = vld [vmem:[#allocation4] sm:$0xff]
          %676 = vset.pattern.permute.xlu0 0
          %677 = vperm.xlu0 %676, %v674
          %v678 = vpop.permute.xlu0 %677
          %v680 = vrcp.pop %v678
          %v681 = vmul.f32 %v673, %v680
          %682 = vst [vmem:[%s268] sm:$0xff] %v681
        $region52: #{tpu_custom_call.1} parent=31 // pred_fallthru
          _
        %s683 = sand.u32 %s134, 1
        %s684 = scalar_lea.sflag [#allocation10], %s683
        %s685 = sand.u32 %s134, 1
        %s686 = smul.addr %s685, 8
        %s687 = scalar_lea.vmem [#allocation14], %s686
        // Predicated region
        $region53: #{tpu_custom_call.1} parent=31 // pred_check
          %p688 = pneg %p144
        $region54: #{tpu_custom_call.1} parent=31 // pred_check_branch
          %690 = sbr.rel (%p688) target = $region56
        $region55: #{tpu_custom_call.1} parent=31 // pred_region
          %s692 = ssub.s32 128, 128
          %693 = vsyncadd %s684, %s692
          %s694 = sadd.s32 %s34, %s33
          %s695 = smul.addr %s694, 128
          %s696 = scalar_lea.hbm %s4, %s695
          %s698 = sshll.u32 %s687, 4
          %s699 = int_to_ptr.vmem [resolvable:$true] %s698
          %701 = dma.vmem_to_hbm [thread:$0]  %s699, 128, %s696, %s684
        $region56: #{tpu_custom_call.1} parent=31 // pred_fallthru
          _
      $region32: #{tpu_custom_call.1} parent=5 // pred_fallthru
        _
      %p702 = scmp.le.s32.totalorder 2, %s23
      // Predicated region
      $region57: #{tpu_custom_call.1} parent=5 // pred_check
        %p703 = pneg %p702
      $region58: #{tpu_custom_call.1} parent=5 // pred_check_branch
        %705 = sbr.rel (%p703) target = $region60
      $region59: #{tpu_custom_call.1} parent=5 // pred_region
        %s706 = ssub.s32 %s23, 2
        // Predicated region
        $region61: #{tpu_custom_call.1} parent=59 // pred_check
          %p707 = pneg %p150
        $region62: #{tpu_custom_call.1} parent=59 // pred_check_branch
          %709 = sbr.rel (%p707) target = $region64
        $region63: #{tpu_custom_call.1} parent=59 // pred_region
          %s710 = sand.u32 %s135, 1
          %s711 = scalar_lea.sflag [#allocation10], %s710
          %s712 = sand.u32 %s135, 1
          %s713 = smul.addr %s712, 8
          %s714 = scalar_lea.vmem [#allocation14], %s713
          %715 = dma.done %s711, 128
        $region64: #{tpu_custom_call.1} parent=59 // pred_fallthru
          _
      $region60: #{tpu_custom_call.1} parent=5 // pred_fallthru
        _
    $region6: #{tpu_custom_call.1} parent=1 // loop_footer
      %s27 = sadd.s32 1, %s23
    $region7: #{tpu_custom_call.1} parent=1 // loop_footer_branch
      %22 = sbr.rel target = $region3
    $region8: #{tpu_custom_call.1} parent=1 // loop_exit
      _
    %716 = vsyncpa [#allocation9], 1
    %s717 = scalar_lea.sflag [#allocation9], 1
    %718 = vsyncpa %s717, 1
    %719 = vsyncpa [#allocation12], 1
    %s720 = scalar_lea.sflag [#allocation12], 1
    %721 = vsyncpa %s720, 1
    %722 = vsyncpa [#allocation10], 1
    %s723 = scalar_lea.sflag [#allocation10], 1
    %724 = vsyncpa %s723, 1

</llo_original>
